<compile_context>
chip_gen: v7x
topology: tpu7x:2x2x1
jax: 0.10.0
libtpu: 0.0.40
codegen_flags: <defaults>
</compile_context>

<pallas_src>
import functools

import jax
import jax.numpy as jnp
from jax.experimental import pallas as pl
from jax.experimental.pallas import tpu as pltpu

_BLOCK_BYTES = 2 * 1024 * 1024          # <= 2 MiB per block (v5e-safe, near roofline)
_LANE_CHOICES = (1024, 512, 256, 128)   # lane-dense last-dim candidates


def _brightness_kernel(rate_ref, x_ref, o_ref):
    # rate_ref: SMEM (1,) f32 scalar ; x_ref / o_ref: VMEM tiles (native dtype).
    rate = rate_ref[0]
    x = x_ref[...].astype(jnp.float32)
    o_ref[...] = jnp.clip(x + rate, 0.0, 1.0).astype(o_ref.dtype)


def _run_kernel(x, rate, block_shape, grid):
    """Launch the elementwise brightness kernel over `x` tiled by block_shape."""
    ndim = x.ndim
    index_map = lambda i: (i,) + (0,) * (ndim - 1)
    total = x.size
    itemsize = jnp.dtype(x.dtype).itemsize

    grid_spec = pltpu.PrefetchScalarGridSpec(
        num_scalar_prefetch=0,
        grid=grid,
        in_specs=[
            pl.BlockSpec(memory_space=pltpu.MemorySpace.SMEM),   # rate scalar
            pl.BlockSpec(block_shape, index_map),                # image tile
        ],
        out_specs=pl.BlockSpec(block_shape, index_map),
    )

    return pl.pallas_call(
        _brightness_kernel,
        out_shape=jax.ShapeDtypeStruct(x.shape, x.dtype),
        grid_spec=grid_spec,
        compiler_params=pltpu.CompilerParams(
            dimension_semantics=("parallel",)),
        cost_estimate=pl.CostEstimate(
            flops=3 * total,                     # add + max + min
            transcendentals=0,
            bytes_accessed=2 * total * itemsize  # 1 read + 1 write
        ),
    )(rate, x)


@functools.partial(jax.jit, static_argnames=("min_r", "max_r"))
def random_bright(image, key, min_r, max_r):
    """image: float[N, C, H, W] in [0, 1]. Returns same shape/dtype."""
    orig_shape = image.shape
    total = image.size
    itemsize = jnp.dtype(image.dtype).itemsize

    # rate ~ U(min_r, max_r)  (replaces python random.uniform, deterministic via key)
    rate = jax.random.uniform(key, (1,), dtype=jnp.float32,
                              minval=min_r, maxval=max_r)

    # ---- fast path: lane-dense 2-D slab (rows, lanes), no pad / no slice ----
    lanes = next((l for l in _LANE_CHOICES if total % l == 0), None)
    if lanes is not None:
        rows = total // lanes
        cap_rows = max(8, (_BLOCK_BYTES // (lanes * itemsize)) // 8 * 8)
        if rows <= cap_rows:
            tile_rows = rows        # block == full dim -> always legal
        else:
            tile_rows = cap_rows    # multiple of 8; partial last block masked by Pallas
        x2d = image.reshape(rows, lanes)          # bitcast-level reshape, no copy
        out = _run_kernel(x2d, rate, (tile_rows, lanes),
                          (pl.cdiv(rows, tile_rows),))
        return out.reshape(orig_shape)

    # ---- fallback: total % 128 != 0.  Keep the natural spatial layout with
    # full (H, W) blocks (legal regardless of the 8/128 rule) tiled over the
    # flattened batch*channel axis.  Still zero extra HBM passes; stores may
    # be lane-masked, acceptable for this ragged corner case.
    N, C, H, W = orig_shape
    x3d = image.reshape(N * C, H, W)
    plane_bytes = max(1, H * W * itemsize)
    tile_b = max(1, min(N * C, _BLOCK_BYTES // plane_bytes))
    out = _run_kernel(x3d, rate, (tile_b, H, W),
                      (pl.cdiv(N * C, tile_b),))
    return out.reshape(orig_shape)


def random_bright_forward(image_and_cover, key, min_r, max_r):
    """Mirror of RandomBright.forward: takes (image, cover_image), ignores cover."""
    image, _cover_image = image_and_cover
    return random_bright(image, key, min_r, max_r)


if __name__ == "__main__":
    key = jax.random.PRNGKey(0)
    k_img, k_cover, k_rate = jax.random.split(key, 3)

    N, C, H, W = 2, 4, 16, 16
    image = jax.random.uniform(k_img, (N, C, H, W), dtype=jnp.float32)
    cover_image = jax.random.uniform(k_cover, (N, C, H, W), dtype=jnp.float32)  # carried, unused

    min_r, max_r = -0.3, 0.3
    out = random_bright_forward((image, cover_image), k_rate, min_r, max_r)
    out = jax.block_until_ready(out)

    # reference check in plain JAX (same key => same rate)
    rate = jax.random.uniform(k_rate, (1,), dtype=jnp.float32,
                              minval=min_r, maxval=max_r)[0]
    ref = jnp.clip(image + rate, 0.0, 1.0)
    assert out.shape == (N, C, H, W)
    assert out.dtype == jnp.float32
    assert jnp.allclose(out, ref, atol=1e-6), "mismatch vs reference (fast path)"

    # also exercise the ragged fallback path (total not a multiple of 128)
    img2 = jax.random.uniform(k_cover, (2, 3, 15, 17), dtype=jnp.float32)
    out2 = jax.block_until_ready(random_bright(img2, k_rate, min_r, max_r))
    ref2 = jnp.clip(img2 + rate, 0.0, 1.0)
    assert jnp.allclose(out2, ref2, atol=1e-6), "mismatch vs reference (fallback path)"

    print("KERNEL_OK")
</pallas_src>

<mosaic_0001>
module attributes {stable_mosaic.version = 11 : i64} {
  func.func @_brightness_kernel(%arg0: i32, %arg1: memref<1xf32, #tpu.memory_space<smem>>, %arg2: memref<2x1024xf32, #tpu.memory_space<vmem>>, %arg3: memref<2x1024xf32, #tpu.memory_space<vmem>>) attributes {dimension_semantics = [#tpu.dimension_semantics<parallel>], iteration_bounds = array<i64: 1>, scalar_prefetch = 0 : i64, scratch_operands = 0 : i64, tpu.core_type = #tpu.core_type<tc>, window_params = [{transform_indices = @transform_0, window_bounds = array<i64: 1>}, {transform_indices = @transform_1, window_bounds = array<i64: 2, 1024>}, {transform_indices = @transform_2, window_bounds = array<i64: 2, 1024>}]} {
    %c0 = arith.constant 0 : index
    %0 = memref.load %arg1[%c0] : memref<1xf32, #tpu.memory_space<smem>>
    %c0_0 = arith.constant 0 : index
    %c0_1 = arith.constant 0 : index
    %1 = vector.load %arg2[%c0_0, %c0_1] : memref<2x1024xf32, #tpu.memory_space<vmem>>, vector<2x1024xf32>
    %2 = vector.broadcast %0 : f32 to vector<2x1024xf32>
    %3 = arith.addf %1, %2 : vector<2x1024xf32>
    %cst = arith.constant 0.000000e+00 : f32
    %cst_2 = arith.constant 1.000000e+00 : f32
    %4 = vector.broadcast %cst : f32 to vector<2x1024xf32>
    %5 = arith.maximumf %4, %3 : vector<2x1024xf32>
    %6 = vector.broadcast %cst_2 : f32 to vector<2x1024xf32>
    %7 = arith.minimumf %6, %5 : vector<2x1024xf32>
    %c0_3 = arith.constant 0 : index
    %c0_4 = arith.constant 0 : index
    %8 = vector.load %arg3[%c0_3, %c0_4] : memref<2x1024xf32, #tpu.memory_space<vmem>>, vector<2x1024xf32>
    tpu.vector_store %arg3[%c0_3, %c0_4], %7 {strides = array<i32>} : memref<2x1024xf32, #tpu.memory_space<vmem>>, vector<2x1024xf32>,
    return
  }
  func.func @transform_0(%arg0: i32) -> i32 {
    %c0_i32 = arith.constant 0 : i32
    %c0_i32_0 = arith.constant 0 : i32
    return %c0_i32 : i32
  }
  func.func @transform_1(%arg0: i32) -> (i32, i32) {
    %c0_i32 = arith.constant 0 : i32
    %c0_i32_0 = arith.constant 0 : i32
    return %arg0, %c0_i32 : i32, i32
  }
  func.func @transform_2(%arg0: i32) -> (i32, i32) {
    %c0_i32 = arith.constant 0 : i32
    %c0_i32_0 = arith.constant 0 : i32
    return %arg0, %c0_i32 : i32, i32
  }
}

</mosaic_0001>

<llo_original>
// kernel: random_bright.1
$region0: #{random_bright.1}
  #allocation0 [shape = 'u32[]', space=smem, size = 0x4, offset = 0x4, fixed_abs, tag = 'smem constant byte address 0x4 - core index']
  #allocation1 [shape = 'u32[144,128]{1,0:T(1,128)}', space=vmem, size = 0x12000, scoped, tag = 'internal scratch']
  #allocation2 [shape = 'f32[1]{0:T(128)S(6)}', space=smem, size = 0x200, scoped, tag = 'scoped memory for random_bright.1']
  %s0 = inlined_call_operand.<no memory space> [shape: f32[1], index: 0, kind: input, shape index: {}]
  %s1 = inlined_call_operand.vmem [shape: f32[2,1024], index: 1, kind: input, shape index: {}]
  %s2 = inlined_call_operand.vmem [shape: f32[2,1024], index: 2, kind: output, shape index: {}]
  %s3 = sld [smem:[#allocation0]]
  $region18: #{random_bright.1} parent=0
    _
  %s5 = ssub.s32 1, %s3
  %s6 = scalar_select 0, %s5, %s3
  %7 = sst [smem:[#allocation2]] %s0
  // Predicated region
  $region2: #{random_bright.1} parent=0 // pred_check
    _
  $region3: #{random_bright.1} parent=0 // pred_check_branch
    %9 = sbr.rel (0) target = $region5
  $region4: #{random_bright.1} parent=0 // pred_region
    _
  $region5: #{random_bright.1} parent=0 // pred_fallthru
    _
  // Predicated region
  $region6: #{random_bright.1} parent=0 // pred_check
    _
  $region7: #{random_bright.1} parent=0 // pred_check_branch
    %11 = sbr.rel (0) target = $region9
  $region8: #{random_bright.1} parent=0 // pred_region
    _
  $region9: #{random_bright.1} parent=0 // pred_fallthru
    _
  %s12 = sld [smem:[#allocation2]]
  %v13 = vld [vmem:[%s1] sm:$0xff]
  %v14 = vld [vmem:[%s1 + $0x8] sm:$0xff]
  %v15 = vstv %s12
  %v16 = vadd.f32 %v13, %v15
  %v17 = vadd.f32 %v14, %v15
  %v18 = vmax.f32 %v16, 0.0
  %v19 = vmax.f32 %v17, 0.0
  %v20 = vmin.f32 %v18, 1.0
  %v21 = vmin.f32 %v19, 1.0
  %22 = vst [vmem:[%s2] sm:$0xff] %v20
  %23 = vst [vmem:[%s2 + $0x8] sm:$0xff] %v21
  // Predicated region
  $region10: #{random_bright.1} parent=0 // pred_check
    _
  $region11: #{random_bright.1} parent=0 // pred_check_branch
    %25 = sbr.rel (0) target = $region13
  $region12: #{random_bright.1} parent=0 // pred_region
    _
  $region13: #{random_bright.1} parent=0 // pred_fallthru
    _
  // Predicated region
  $region14: #{random_bright.1} parent=0 // pred_check
    _
  $region15: #{random_bright.1} parent=0 // pred_check_branch
    %27 = sbr.rel (0) target = $region17
  $region16: #{random_bright.1} parent=0 // pred_region
    _
  $region17: #{random_bright.1} parent=0 // pred_fallthru
    _

</llo_original>
